<compile_context>
chip_gen: v7x
topology: tpu7x:2x2x1
jax: 0.10.0
libtpu: 0.0.40
codegen_flags: <defaults>
</compile_context>

<pallas_src>
import functools

import jax
import jax.numpy as jnp
from jax.experimental import pallas as pl
from jax.experimental.pallas import tpu as pltpu


# ----------------------------- small helpers --------------------------------

def _round_up(n, m):
    return ((n + m - 1) // m) * m


def _device_kind():
    try:
        return jax.devices()[0].device_kind.lower()
    except Exception:
        return ""


def _num_tensorcores():
    # v7x has 2 TensorCores per chip; v5e / v6e have 1.
    return 2 if "v7" in _device_kind() else 1


def _default_mxu_dtype():
    # v6e / v7x MXUs are bf16-native (f32 operands decompose into extra passes).
    kind = _device_kind()
    return jnp.bfloat16 if ("v6" in kind or "v7" in kind) else jnp.float32


def _choose_tb(B, max_tb=4096):
    """Batch tile: multiple of 8 and as fat as possible (grid-step overhead
    dominates this kernel).  Single grid step on 1-TC parts; an even number of
    equally-sized steps on v7x so both TensorCores get work."""
    b8 = _round_up(max(B, 8), 8)
    max_tb = _round_up(max_tb, 8)
    if _num_tensorcores() == 1 or b8 <= 8:
        return min(b8, max_tb)
    # v7x: exactly 2*k steps, never smaller tiles than needed for parallelism.
    steps = max(2, 2 * pl.cdiv(b8, 2 * max_tb))
    return min(_round_up(pl.cdiv(b8, steps), 8), max_tb)


# --------------------------------- kernel -----------------------------------

def _dynamic_fc_kernel(x_ref, w_ref, out_ref, *, degree, knots, d, act,
                       mxu_dtype):
    x = x_ref[...]                              # (TB, IP) f32; padded cols are 0
    x_treat = x[:, 0:1]                         # (TB, 1)

    # x_aug: column 0 replaced by 1.0 (bias slot); feature cols unchanged;
    # zero-padded tail columns stay zero (matching zero-padded weight rows).
    col = jax.lax.broadcasted_iota(jnp.int32, x.shape, 1)
    x_aug = jnp.where(col == 0, 1.0, x)         # pure VPU
    x_mxu = x_aug.astype(mxu_dtype)

    # acc = sum_k basis_k(x_treat) * (x_aug @ W[k]); basis columns are computed
    # incrementally as (TB, 1) vregs -- no concatenate, no lane rotations.
    acc = jnp.zeros(out_ref.shape, jnp.float32)
    p = jnp.ones_like(x_treat)
    for j in range(d):
        if j == 0:
            bj = p
        elif j <= degree:
            p = p * x_treat
            bj = p
        elif degree == 1:
            # Faithful to Truncated_power.forward (indexes knots[j - degree]).
            bj = jnp.maximum(x_treat - knots[j - degree], 0.0)
        else:
            bj = jnp.maximum(x_treat - knots[j - degree - 1], 0.0) ** degree
        yj = jnp.dot(x_mxu, w_ref[j], preferred_element_type=jnp.float32)
        acc = acc + bj * yj                     # (TB, OUTD_PAD) VPU

    if act == "relu":
        acc = jnp.maximum(acc, 0.0)
    elif act == "tanh":
        acc = jnp.tanh(acc)
    elif act == "sigmoid":
        acc = jax.nn.sigmoid(acc)
    # act is None -> identity

    out_ref[...] = acc.astype(out_ref.dtype)    # lane-dense (OUTD_PAD % 128 == 0)


# -------------------------------- wrapper ------------------------------------

def prepare_dynamic_fc_weight(weight, bias, *, isbias=1, mxu_dtype=None):
    """Build the padded (d, IP, OUTD_PAD) kernel weight.

    Row 0 of the IP axis is the bias slot, rows 1..ind are the features,
    remaining rows / output columns are zero padding.  Hoist this out of the
    hot loop when the layer is applied repeatedly with fixed parameters.
    """
    if mxu_dtype is None:
        mxu_dtype = _default_mxu_dtype()
    ind, outd, d = weight.shape
    ip = _round_up(ind + 1, 8)
    outd_pad = _round_up(outd, 128)
    w_kio = jnp.transpose(weight, (2, 0, 1)).astype(jnp.float32)        # (d, ind, outd)
    if isbias and bias is not None:
        b_k1o = jnp.transpose(bias, (1, 0)).astype(jnp.float32)[:, None, :]
    else:
        b_k1o = jnp.zeros((d, 1, outd), jnp.float32)
    w3 = jnp.concatenate([b_k1o, w_kio], axis=1)                        # (d, ind+1, outd)
    w3 = jnp.pad(w3, ((0, 0), (0, ip - (ind + 1)), (0, outd_pad - outd)))
    return w3.astype(mxu_dtype)


def dynamic_fc(x, weight, bias, *, degree, knots, act="relu", isbias=1,
               islastlayer=0, max_tb=4096, mxu_dtype=None,
               prepared_weight=None):
    """x: (B, ind+1); weight: (ind, outd, d); bias: (outd, d) or None."""
    B = x.shape[0]
    ind, outd, d = weight.shape
    assert d == degree + 1 + len(knots)
    assert x.shape[1] == ind + 1

    if degree == 1 and len(knots) > 0:
        # TODO(synk): upstream Truncated_power indexes knots[len(knots)] for the
        # last basis column when degree == 1 (IndexError in PyTorch too); raise
        # a clear error instead of silently diverging from the reference.
        raise ValueError("degree == 1 with non-empty knots reproduces an "
                         "out-of-range knot index in the reference module")

    if mxu_dtype is None:
        mxu_dtype = _default_mxu_dtype()

    ip = _round_up(ind + 1, 8)
    outd_pad = _round_up(outd, 128)

    w3 = (prepared_weight if prepared_weight is not None else
          prepare_dynamic_fc_weight(weight, bias, isbias=isbias,
                                    mxu_dtype=mxu_dtype))
    assert w3.shape == (d, ip, outd_pad)

    # --- batch tiling / padding (fat tiles; grid-step overhead dominates) ---
    tb = _choose_tb(B, max_tb)
    B_pad = pl.cdiv(B, tb) * tb
    x_f32 = x.astype(jnp.float32)
    x_f32 = jnp.pad(x_f32, ((0, B_pad - B), (0, ip - (ind + 1))))

    kernel = functools.partial(
        _dynamic_fc_kernel, degree=degree,
        knots=tuple(float(k) for k in knots), d=d, act=act,
        mxu_dtype=mxu_dtype)

    out = pl.pallas_call(
        kernel,
        out_shape=jax.ShapeDtypeStruct((B_pad, outd_pad), jnp.float32),
        grid_spec=pltpu.PrefetchScalarGridSpec(
            num_scalar_prefetch=0,
            grid=(B_pad // tb,),
            in_specs=[
                pl.BlockSpec((tb, ip), lambda i: (i, 0)),
                # constant block index: weight stays resident across the grid
                pl.BlockSpec((d, ip, outd_pad), lambda i: (0, 0, 0)),
            ],
            out_specs=pl.BlockSpec((tb, outd_pad), lambda i: (i, 0)),
        ),
        compiler_params=pltpu.CompilerParams(
            dimension_semantics=("parallel",)),
    )(x_f32, w3)

    out = out[:B, :outd]
    if not islastlayer:
        # lane-dense kernel output; cheap prepend of the treat column outside.
        out = jnp.concatenate([x[:, 0:1].astype(out.dtype), out], axis=1)
    return out


# ------------------------------ pure-JAX reference ---------------------------

def _reference(x, weight, bias, *, degree, knots, act, isbias, islastlayer):
    """Pure-JAX reference mirroring the PyTorch forward."""
    x_treat = x[:, 0]
    x_feature = x[:, 1:]
    B = x.shape[0]
    d = degree + 1 + len(knots)
    cols = []
    for j in range(d):
        if j == 0:
            cols.append(jnp.ones((B,), jnp.float32))
        elif j <= degree:
            cols.append(x_treat ** j)
        elif degree == 1:
            cols.append(jnp.maximum(x_treat - knots[j - degree], 0.0))
        else:
            cols.append(jnp.maximum(x_treat - knots[j - degree - 1], 0.0) ** degree)
    basis = jnp.stack(cols, axis=1)                                  # (B, d)
    xfw = jnp.einsum("bi,iok->bok", x_feature, weight)               # (B, outd, d)
    out = jnp.sum(xfw * basis[:, None, :], axis=2)                   # (B, outd)
    if isbias:
        out = out + basis @ bias.T
    if act == "relu":
        out = jnp.maximum(out, 0.0)
    elif act == "tanh":
        out = jnp.tanh(out)
    elif act == "sigmoid":
        out = jax.nn.sigmoid(out)
    if not islastlayer:
        out = jnp.concatenate([x_treat[:, None], out], axis=1)
    return out


if __name__ == "__main__":
    degree, knots = 2, [0.33, 0.66]
    d = degree + 1 + len(knots)
    key = jax.random.PRNGKey(0)

    # --- config 1: hidden layer (relu, bias, islastlayer=0), f32 MXU path ---
    B, ind, outd = 64, 16, 32
    k1, k2, k3, k4, k5, k6 = jax.random.split(key, 6)
    x_treat = jax.random.uniform(k1, (B, 1), jnp.float32)            # in [0, 1]
    x_feat = jax.random.normal(k2, (B, ind), jnp.float32)
    x = jnp.concatenate([x_treat, x_feat], axis=1)                   # (B, ind+1)
    weight = jax.random.uniform(k3, (ind, outd, d), jnp.float32)     # ~ torch.rand
    bias = jax.random.uniform(k4, (outd, d), jnp.float32)

    out = jax.block_until_ready(
        dynamic_fc(x, weight, bias, degree=degree, knots=knots,
                   act="relu", isbias=1, islastlayer=0,
                   mxu_dtype=jnp.float32))
    ref = _reference(x, weight, bias, degree=degree, knots=knots,
                     act="relu", isbias=1, islastlayer=0)
    assert out.shape == (B, outd + 1), out.shape
    assert jnp.allclose(out, ref, atol=1e-3, rtol=1e-3), float(
        jnp.max(jnp.abs(out - ref)))

    # --- config 2: last layer, no bias, tanh, ragged batch (exercises padding) ---
    B2, outd2 = 20, 1
    x2 = jnp.concatenate([jax.random.uniform(k5, (B2, 1), jnp.float32),
                          jax.random.normal(k6, (B2, ind), jnp.float32)], axis=1)
    w2t = jax.random.uniform(k3, (ind, outd2, d), jnp.float32)
    out2 = jax.block_until_ready(
        dynamic_fc(x2, w2t, None, degree=degree, knots=knots,
                   act="tanh", isbias=0, islastlayer=1,
                   mxu_dtype=jnp.float32))
    ref2 = _reference(x2, w2t, None, degree=degree, knots=knots,
                      act="tanh", isbias=0, islastlayer=1)
    assert out2.shape == (B2, outd2), out2.shape
    assert jnp.allclose(out2, ref2, atol=1e-3, rtol=1e-3), float(
        jnp.max(jnp.abs(out2 - ref2)))

    # --- config 3: auto MXU dtype (bf16 on v6e/v7x, f32 on v5e), hoisted weight ---
    w_prepared = prepare_dynamic_fc_weight(weight, bias, isbias=1)
    out3 = jax.block_until_ready(
        dynamic_fc(x, weight, bias, degree=degree, knots=knots,
                   act="relu", isbias=1, islastlayer=0,
                   prepared_weight=w_prepared))
    assert out3.shape == (B, outd + 1)
    assert jnp.allclose(out3, ref, atol=2e-1, rtol=1e-1), float(
        jnp.max(jnp.abs(out3 - ref)))

    print("KERNEL_OK")
</pallas_src>

<mosaic_0001>
module attributes {stable_mosaic.version = 11 : i64} {
  func.func @_dynamic_fc_kernel(%arg0: i32, %arg1: memref<64x24xf32, #tpu.memory_space<vmem>>, %arg2: memref<5x24x128xf32, #tpu.memory_space<vmem>>, %arg3: memref<64x128xf32, #tpu.memory_space<vmem>>) attributes {dimension_semantics = [#tpu.dimension_semantics<parallel>], iteration_bounds = array<i64: 1>, scalar_prefetch = 0 : i64, scratch_operands = 0 : i64, tpu.core_type = #tpu.core_type<tc>, window_params = [{transform_indices = @transform_0, window_bounds = array<i64: 64, 24>}, {pipeline_mode = #tpu.pipeline_mode<synchronous>, transform_indices = @transform_1, window_bounds = array<i64: 5, 24, 128>}, {transform_indices = @transform_2, window_bounds = array<i64: 64, 128>}]} {
    %c0 = arith.constant 0 : index
    %c0_0 = arith.constant 0 : index
    %0 = vector.load %arg1[%c0, %c0_0] : memref<64x24xf32, #tpu.memory_space<vmem>>, vector<64x24xf32>
    %1 = vector.extract_strided_slice %0 {offsets = [0, 0], sizes = [64, 1], strides = [1, 1]} : vector<64x24xf32> to vector<64x1xf32>
    %2 = tpu.iota {dimensions = array<i32: 1>} : vector<64x24xi32>
    %c0_i32 = arith.constant 0 : i32
    %3 = vector.broadcast %c0_i32 : i32 to vector<64x24xi32>
    %4 = arith.cmpi eq, %2, %3 : vector<64x24xi32>
    %cst = arith.constant 1.000000e+00 : f32
    %5 = vector.broadcast %cst : f32 to vector<64x24xf32>
    %6 = arith.select %4, %5, %0 : vector<64x24xi1>, vector<64x24xf32>
    %cst_1 = arith.constant 0.000000e+00 : f32
    %7 = vector.broadcast %cst_1 : f32 to vector<64x128xf32>
    %cst_2 = arith.constant 1.000000e+00 : f32
    %8 = vector.broadcast %cst_2 : f32 to vector<64x1xf32>
    %c0_3 = arith.constant 0 : index
    %c0_4 = arith.constant 0 : index
    %c0_5 = arith.constant 0 : index
    %9 = vector.load %arg2[%c0_3, %c0_4, %c0_5] : memref<5x24x128xf32, #tpu.memory_space<vmem>>, vector<1x24x128xf32>
    %10 = vector.shape_cast %9 : vector<1x24x128xf32> to vector<24x128xf32>
    %cst_6 = arith.constant dense<0.000000e+00> : vector<64x128xf32>
    %11 = tpu.matmul %6, %10, %cst_6 {dimension_numbers = #tpu.dot_dimension_numbers<[1], [0], [0], [1], [0, 0, 1, 1], [], []>} : vector<64x24xf32>, vector<24x128xf32>, vector<64x128xf32> -> vector<64x128xf32>
    %12 = vector.broadcast %8 : vector<64x1xf32> to vector<64x128xf32>
    %13 = arith.mulf %12, %11 : vector<64x128xf32>
    %14 = arith.addf %7, %13 : vector<64x128xf32>
    %15 = arith.mulf %8, %1 : vector<64x1xf32>
    %c1 = arith.constant 1 : index
    %c0_7 = arith.constant 0 : index
    %c0_8 = arith.constant 0 : index
    %16 = vector.load %arg2[%c1, %c0_7, %c0_8] : memref<5x24x128xf32, #tpu.memory_space<vmem>>, vector<1x24x128xf32>
    %17 = vector.shape_cast %16 : vector<1x24x128xf32> to vector<24x128xf32>
    %cst_9 = arith.constant dense<0.000000e+00> : vector<64x128xf32>
    %18 = tpu.matmul %6, %17, %cst_9 {dimension_numbers = #tpu.dot_dimension_numbers<[1], [0], [0], [1], [0, 0, 1, 1], [], []>} : vector<64x24xf32>, vector<24x128xf32>, vector<64x128xf32> -> vector<64x128xf32>
    %19 = vector.broadcast %15 : vector<64x1xf32> to vector<64x128xf32>
    %20 = arith.mulf %19, %18 : vector<64x128xf32>
    %21 = arith.addf %14, %20 : vector<64x128xf32>
    %22 = arith.mulf %15, %1 : vector<64x1xf32>
    %c2 = arith.constant 2 : index
    %c0_10 = arith.constant 0 : index
    %c0_11 = arith.constant 0 : index
    %23 = vector.load %arg2[%c2, %c0_10, %c0_11] : memref<5x24x128xf32, #tpu.memory_space<vmem>>, vector<1x24x128xf32>
    %24 = vector.shape_cast %23 : vector<1x24x128xf32> to vector<24x128xf32>
    %cst_12 = arith.constant dense<0.000000e+00> : vector<64x128xf32>
    %25 = tpu.matmul %6, %24, %cst_12 {dimension_numbers = #tpu.dot_dimension_numbers<[1], [0], [0], [1], [0, 0, 1, 1], [], []>} : vector<64x24xf32>, vector<24x128xf32>, vector<64x128xf32> -> vector<64x128xf32>
    %26 = vector.broadcast %22 : vector<64x1xf32> to vector<64x128xf32>
    %27 = arith.mulf %26, %25 : vector<64x128xf32>
    %28 = arith.addf %21, %27 : vector<64x128xf32>
    %cst_13 = arith.constant 3.300000e-01 : f32
    %29 = vector.broadcast %cst_13 : f32 to vector<64x1xf32>
    %30 = arith.subf %1, %29 : vector<64x1xf32>
    %cst_14 = arith.constant 0.000000e+00 : f32
    %31 = vector.broadcast %cst_14 : f32 to vector<64x1xf32>
    %32 = arith.maximumf %30, %31 : vector<64x1xf32>
    %33 = arith.mulf %32, %32 : vector<64x1xf32>
    %c3 = arith.constant 3 : index
    %c0_15 = arith.constant 0 : index
    %c0_16 = arith.constant 0 : index
    %34 = vector.load %arg2[%c3, %c0_15, %c0_16] : memref<5x24x128xf32, #tpu.memory_space<vmem>>, vector<1x24x128xf32>
    %35 = vector.shape_cast %34 : vector<1x24x128xf32> to vector<24x128xf32>
    %cst_17 = arith.constant dense<0.000000e+00> : vector<64x128xf32>
    %36 = tpu.matmul %6, %35, %cst_17 {dimension_numbers = #tpu.dot_dimension_numbers<[1], [0], [0], [1], [0, 0, 1, 1], [], []>} : vector<64x24xf32>, vector<24x128xf32>, vector<64x128xf32> -> vector<64x128xf32>
    %37 = vector.broadcast %33 : vector<64x1xf32> to vector<64x128xf32>
    %38 = arith.mulf %37, %36 : vector<64x128xf32>
    %39 = arith.addf %28, %38 : vector<64x128xf32>
    %cst_18 = arith.constant 6.600000e-01 : f32
    %40 = vector.broadcast %cst_18 : f32 to vector<64x1xf32>
    %41 = arith.subf %1, %40 : vector<64x1xf32>
    %cst_19 = arith.constant 0.000000e+00 : f32
    %42 = vector.broadcast %cst_19 : f32 to vector<64x1xf32>
    %43 = arith.maximumf %41, %42 : vector<64x1xf32>
    %44 = arith.mulf %43, %43 : vector<64x1xf32>
    %c4 = arith.constant 4 : index
    %c0_20 = arith.constant 0 : index
    %c0_21 = arith.constant 0 : index
    %45 = vector.load %arg2[%c4, %c0_20, %c0_21] : memref<5x24x128xf32, #tpu.memory_space<vmem>>, vector<1x24x128xf32>
    %46 = vector.shape_cast %45 : vector<1x24x128xf32> to vector<24x128xf32>
    %cst_22 = arith.constant dense<0.000000e+00> : vector<64x128xf32>
    %47 = tpu.matmul %6, %46, %cst_22 {dimension_numbers = #tpu.dot_dimension_numbers<[1], [0], [0], [1], [0, 0, 1, 1], [], []>} : vector<64x24xf32>, vector<24x128xf32>, vector<64x128xf32> -> vector<64x128xf32>
    %48 = vector.broadcast %44 : vector<64x1xf32> to vector<64x128xf32>
    %49 = arith.mulf %48, %47 : vector<64x128xf32>
    %50 = arith.addf %39, %49 : vector<64x128xf32>
    %cst_23 = arith.constant 0.000000e+00 : f32
    %51 = vector.broadcast %cst_23 : f32 to vector<64x128xf32>
    %52 = arith.maximumf %50, %51 : vector<64x128xf32>
    %c0_24 = arith.constant 0 : index
    %c0_25 = arith.constant 0 : index
    %53 = vector.load %arg3[%c0_24, %c0_25] : memref<64x128xf32, #tpu.memory_space<vmem>>, vector<64x128xf32>
    tpu.vector_store %arg3[%c0_24, %c0_25], %52 {strides = array<i32>} : memref<64x128xf32, #tpu.memory_space<vmem>>, vector<64x128xf32>,
    return
  }
  func.func @transform_0(%arg0: i32) -> (i32, i32) {
    %c0_i32 = arith.constant 0 : i32
    %c0_i32_0 = arith.constant 0 : i32
    return %arg0, %c0_i32 : i32, i32
  }
  func.func @transform_1(%arg0: i32) -> (i32, i32, i32) {
    %c0_i32 = arith.constant 0 : i32
    %c0_i32_0 = arith.constant 0 : i32
    %c0_i32_1 = arith.constant 0 : i32
    %c0_i32_2 = arith.constant 0 : i32
    return %c0_i32, %c0_i32_0, %c0_i32_1 : i32, i32, i32
  }
  func.func @transform_2(%arg0: i32) -> (i32, i32) {
    %c0_i32 = arith.constant 0 : i32
    %c0_i32_0 = arith.constant 0 : i32
    return %arg0, %c0_i32 : i32, i32
  }
}

</mosaic_0001>

<llo_original>
// kernel: tpu_custom_call.1
$region0: #{tpu_custom_call.1}
  #allocation0 [shape = 'u32[]', space=smem, size = 0x4, offset = 0x4, fixed_abs, tag = 'smem constant byte address 0x4 - core index']
  #allocation1 [shape = 'u32[144,128]{1,0:T(1,128)}', space=vmem, size = 0x12000, scoped, tag = 'internal scratch']
  %s0 = inlined_call_operand.vmem [shape: f32[64,24], index: 0, kind: input, shape index: {}]
  %s1 = inlined_call_operand.hbm [shape: f32[5,24,128], index: 1, kind: input, shape index: {}]
  %s2 = inlined_call_operand.hbm [shape: f32[64,128], index: 2, kind: output, shape index: {}]
  %s3 = sld [smem:[#allocation0]]
  $region22: #{tpu_custom_call.1} parent=0
    _
  %s5 = ssub.s32 1, %s3
  %s6 = scalar_select 0, %s5, %s3
  $region1: #{tpu_custom_call.1} parent=0
    #allocation2 [shape = 'u8[61440]{0}', space=vmem, size = 0xf000, scoped, tag = 'input window, operand 1, single buffered']
    #allocation3 [shape = 's32[1]{0}', space=sflag, size = 0x4, scoped, tag = 'scoped memory for tpu_custom_call.1']
    #allocation4 [shape = 's32[1]{0}', space=sflag, size = 0x4, scoped, tag = 'scoped memory for tpu_custom_call.1']
    #allocation5 [shape = 'u8[32768]{0}', space=vmem, size = 0x8000, scoped, tag = 'output window, operand 0, single buffered']
    %7 = vsyncpa [#allocation3], 0
    %8 = vsyncpa [#allocation4], 0
    // Predicated region
    $region2: #{tpu_custom_call.1} parent=1 // pred_check
      _
    $region3: #{tpu_custom_call.1} parent=1 // pred_check_branch
      %10 = sbr.rel (0) target = $region5
    $region4: #{tpu_custom_call.1} parent=1 // pred_region
      _
    $region5: #{tpu_custom_call.1} parent=1 // pred_fallthru
      _
    // Predicated region
    $region6: #{tpu_custom_call.1} parent=1 // pred_check
      _
    $region7: #{tpu_custom_call.1} parent=1 // pred_check_branch
      %12 = sbr.rel (0) target = $region9
    $region8: #{tpu_custom_call.1} parent=1 // pred_region
      %s14 = ssub.s32 1920, 1920
      %15 = vsyncadd [#allocation3], %s14
      %s16 = sshll.u32 [#allocation2], 4
      %s17 = int_to_ptr.vmem [resolvable:$true] %s16
      %22 = dma.hbm_to_vmem [thread:$0]  %s1, 1920, %s17, [#allocation3], 128, 128, 8
    $region9: #{tpu_custom_call.1} parent=1 // pred_fallthru
      _
    // Predicated region
    $region10: #{tpu_custom_call.1} parent=1 // pred_check
      _
    $region11: #{tpu_custom_call.1} parent=1 // pred_check_branch
      %24 = sbr.rel (0) target = $region13
    $region12: #{tpu_custom_call.1} parent=1 // pred_region
      %25 = dma.done [#allocation3], 1920
    $region13: #{tpu_custom_call.1} parent=1 // pred_fallthru
      _
    %v26 = vld [vmem:[%s0] sm:$0xff]
    %v27 = vld [vmem:[%s0 + $0x8] sm:$0xff]
    %v28 = vld [vmem:[%s0 + $0x10] sm:$0xff]
    %v29 = vld [vmem:[%s0 + $0x18] sm:$0xff]
    %v30 = vld [vmem:[%s0 + $0x20] sm:$0xff]
    %v31 = vld [vmem:[%s0 + $0x28] sm:$0xff]
    %v32 = vld [vmem:[%s0 + $0x30] sm:$0xff]
    %v33 = vld [vmem:[%s0 + $0x38] sm:$0xff]
    %v34 = vlaneseq
    %v35 = vand.u32 %v34, 127
    %vm36 = vcmp.eq.s32.totalorder %v35, 0
    %v37 = vsel %vm36, 1.0, %v26
    %v38 = vsel %vm36, 1.0, %v27
    %v39 = vsel %vm36, 1.0, %v28
    %v40 = vsel %vm36, 1.0, %v29
    %v41 = vsel %vm36, 1.0, %v30
    %v42 = vsel %vm36, 1.0, %v31
    %v43 = vsel %vm36, 1.0, %v32
    %v44 = vsel %vm36, 1.0, %v33
    %v45 = vld [vmem:[#allocation2] sm:$0xff]
    %v46 = vld [vmem:[#allocation2 + $0x8] sm:$0xff]
    %v47 = vld [vmem:[#allocation2 + $0x10] sm:$0xff]
    %s48 = scalar_lea.vmem [#allocation2], 24
    %v49 = vld [vmem:[%s48] sm:$0xff]
    %v50 = vld [vmem:[%s48 + $0x8] sm:$0xff]
    %v51 = vld [vmem:[%s48 + $0x10] sm:$0xff]
    %vm52 = vcmask 195584
    %v54 = vsel %vm52, %v37, 0
    %v57 = vsel %vm52, %v38, 0
    %v60 = vsel %vm52, %v39, 0
    %v63 = vsel %vm52, %v40, 0
    %v66 = vsel %vm52, %v41, 0
    %v69 = vsel %vm52, %v42, 0
    %v72 = vsel %vm52, %v43, 0
    %v75 = vsel %vm52, %v44, 0
    %77 = vmatprep.subr.mxu0 0.0
    %78 = vmatpush1.msra.mxu0 %v49
    %79 = vmatprep.subr.mxu0 0.0
    %80 = vmatpush1.msra.mxu0 %v50
    %81 = vmatprep.subr.mxu0 0.0
    %82 = vmatpush1.msra.mxu0 %v51
    %83 = vmatprep.subr.mxu0 0.0
    %84 = vmatpush1.msra.mxu0 0.0
    %85 = vmatprep.subr.mxu0 0.0
    %86 = vmatpush1.msra.mxu0 0.0
    %87 = vmatprep.subr.mxu0 0.0
    %88 = vmatpush1.msra.mxu0 0.0
    %89 = vmatprep.subr.mxu0 0.0
    %90 = vmatpush1.msra.mxu0 0.0
    %91 = vmatprep.subr.mxu0 0.0
    %92 = vmatpush1.msra.mxu0 0.0
    %93 = vmatprep.subr.mxu0 0.0
    %94 = vmatpush1.msra.mxu0 0.0
    %95 = vmatprep.subr.mxu0 0.0
    %96 = vmatpush1.msra.mxu0 0.0
    %97 = vmatprep.subr.mxu0 0.0
    %98 = vmatpush1.msra.mxu0 0.0
    %99 = vmatprep.subr.mxu0 0.0
    %100 = vmatpush1.msra.mxu0 0.0
    %101 = vmatprep.subr.mxu0 0.0
    %102 = vmatpush1.msra.mxu0 0.0
    %103 = vmatprep.subr.mxu0 0.0
    %104 = vmatpush1.msra.mxu0 0.0
    %105 = vmatprep.subr.mxu0 0.0
    %106 = vmatpush1.msra.mxu0 0.0
    %107 = vmatprep.subr.mxu0 0.0
    %108 = vmatpush1.msra.mxu0 0.0
    %109 = vmatprep.subr.mxu0 0.0
    %110 = vmatpush1.msra.mxu0 0.0
    %111 = vmatprep.subr.mxu0 0.0
    %112 = vmatpush1.msra.mxu0 0.0
    %113 = vmatprep.subr.mxu0 0.0
    %114 = vmatpush1.msra.mxu0 0.0
    %115 = vmatprep.subr.mxu0 0.0
    %116 = vmatpush1.msra.mxu0 0.0
    %117 = vmatprep.subr.mxu0 0.0
    %118 = vmatpush1.msra.mxu0 0.0
    %119 = vmatprep.subr.mxu0 0.0
    %120 = vmatpush1.msra.mxu0 0.0
    %121 = vmatprep.subr.mxu0 0.0
    %122 = vmatpush1.msra.mxu0 0.0
    %123 = vmatprep.subr.mxu0 0.0
    %124 = vmatpush1.msra.mxu0 0.0
    %125 = vmatprep.subr.mxu0 0.0
    %126 = vmatpush1.msra.mxu0 0.0
    %127 = vmatprep.subr.mxu0 0.0
    %128 = vmatpush1.msra.mxu0 0.0
    %129 = vmatprep.subr.mxu0 0.0
    %130 = vmatpush1.msra.mxu0 0.0
    %131 = vmatprep.subr.mxu0 0.0
    %132 = vmatpush1.msra.mxu0 0.0
    %133 = vmatprep.subr.mxu0 0.0
    %134 = vmatpush1.msra.mxu0 0.0
    %135 = vmatprep.subr.mxu0 0.0
    %136 = vmatpush1.msra.mxu0 0.0
    %137 = vmatprep.subr.mxu0 0.0
    %138 = vmatpush1.msra.mxu0 0.0
    %139 = vmatprep.subr.mxu0 0.0
    %140 = vmatpush1.msra.mxu0 0.0
    %141 = vmatprep.mubr.f32.mxu0 0.0
    %142 = vmatmul.mubr.f32.gmra.mrb[0].mxu0 %v54
    %v143 = vpop.f32.mrb[0].mxu0
    %v144 = vadd.f32 0.0, %v143
    %v145 = vpop.f32.mrb[0].mxu0
    %146 = vmatprep.mubr.f32.mxu0 0.0
    %147 = vmatmul.mubr.f32.gmra.mrb[0].mxu0 %v57
    %v148 = vpop.f32.mrb[0].mxu0
    %v149 = vadd.f32 0.0, %v148
    %v150 = vpop.f32.mrb[0].mxu0
    %151 = vmatprep.mubr.f32.mxu0 0.0
    %152 = vmatmul.mubr.f32.gmra.mrb[0].mxu0 %v60
    %v153 = vpop.f32.mrb[0].mxu0
    %v154 = vadd.f32 0.0, %v153
    %v155 = vpop.f32.mrb[0].mxu0
    %156 = vmatprep.mubr.f32.mxu0 0.0
    %157 = vmatmul.mubr.f32.gmra.mrb[0].mxu0 %v63
    %v158 = vpop.f32.mrb[0].mxu0
    %v159 = vadd.f32 0.0, %v158
    %v160 = vpop.f32.mrb[0].mxu0
    %161 = vmatprep.mubr.f32.mxu0 0.0
    %162 = vmatmul.mubr.f32.gmra.mrb[0].mxu0 %v66
    %v163 = vpop.f32.mrb[0].mxu0
    %v164 = vadd.f32 0.0, %v163
    %v165 = vpop.f32.mrb[0].mxu0
    %166 = vmatprep.mubr.f32.mxu0 0.0
    %167 = vmatmul.mubr.f32.gmra.mrb[0].mxu0 %v69
    %v168 = vpop.f32.mrb[0].mxu0
    %v169 = vadd.f32 0.0, %v168
    %v170 = vpop.f32.mrb[0].mxu0
    %171 = vmatprep.mubr.f32.mxu0 0.0
    %172 = vmatmul.mubr.f32.gmra.mrb[0].mxu0 %v72
    %v173 = vpop.f32.mrb[0].mxu0
    %v174 = vadd.f32 0.0, %v173
    %v175 = vpop.f32.mrb[0].mxu0
    %176 = vmatprep.mubr.f32.mxu0 0.0
    %177 = vmatmul.mubr.f32.gmra.mrb[0].mxu0 %v75
    %v178 = vpop.f32.mrb[0].mxu0
    %v179 = vadd.f32 0.0, %v178
    %v180 = vpop.f32.mrb[0].mxu0
    %181 = vdwg.mxu0
    %183 = vset.pattern.permute.xlu0 0
    %184 = vperm.xlu0 %183, %v26
    %v185 = vpop.permute.xlu0 %184
    %188 = vset.pattern.permute.xlu0 0
    %189 = vperm.xlu0 %188, %v27
    %v190 = vpop.permute.xlu0 %189
    %193 = vset.pattern.permute.xlu0 0
    %194 = vperm.xlu0 %193, %v28
    %v195 = vpop.permute.xlu0 %194
    %198 = vset.pattern.permute.xlu0 0
    %199 = vperm.xlu0 %198, %v29
    %v200 = vpop.permute.xlu0 %199
    %203 = vset.pattern.permute.xlu0 0
    %204 = vperm.xlu0 %203, %v30
    %v205 = vpop.permute.xlu0 %204
    %208 = vset.pattern.permute.xlu0 0
    %209 = vperm.xlu0 %208, %v31
    %v210 = vpop.permute.xlu0 %209
    %213 = vset.pattern.permute.xlu0 0
    %214 = vperm.xlu0 %213, %v32
    %v215 = vpop.permute.xlu0 %214
    %218 = vset.pattern.permute.xlu0 0
    %219 = vperm.xlu0 %218, %v33
    %v220 = vpop.permute.xlu0 %219
    %v222 = vmul.f32 %v185, %v144
    %v223 = vmul.f32 %v190, %v149
    %v224 = vmul.f32 %v195, %v154
    %v225 = vmul.f32 %v200, %v159
    %v226 = vmul.f32 %v205, %v164
    %v227 = vmul.f32 %v210, %v169
    %v228 = vmul.f32 %v215, %v174
    %v229 = vmul.f32 %v220, %v179
    %230 = vmatprep.subr.mxu0 0.0
    %231 = vmatpush1.msra.mxu0 %v45
    %232 = vmatprep.subr.mxu0 0.0
    %233 = vmatpush1.msra.mxu0 %v46
    %234 = vmatprep.subr.mxu0 0.0
    %235 = vmatpush1.msra.mxu0 %v47
    %236 = vmatprep.subr.mxu0 0.0
    %237 = vmatpush1.msra.mxu0 0.0
    %238 = vmatprep.subr.mxu0 0.0
    %239 = vmatpush1.msra.mxu0 0.0
    %240 = vmatprep.subr.mxu0 0.0
    %241 = vmatpush1.msra.mxu0 0.0
    %242 = vmatprep.subr.mxu0 0.0
    %243 = vmatpush1.msra.mxu0 0.0
    %244 = vmatprep.subr.mxu0 0.0
    %245 = vmatpush1.msra.mxu0 0.0
    %246 = vmatprep.subr.mxu0 0.0
    %247 = vmatpush1.msra.mxu0 0.0
    %248 = vmatprep.subr.mxu0 0.0
    %249 = vmatpush1.msra.mxu0 0.0
    %250 = vmatprep.subr.mxu0 0.0
    %251 = vmatpush1.msra.mxu0 0.0
    %252 = vmatprep.subr.mxu0 0.0
    %253 = vmatpush1.msra.mxu0 0.0
    %254 = vmatprep.subr.mxu0 0.0
    %255 = vmatpush1.msra.mxu0 0.0
    %256 = vmatprep.subr.mxu0 0.0
    %257 = vmatpush1.msra.mxu0 0.0
    %258 = vmatprep.subr.mxu0 0.0
    %259 = vmatpush1.msra.mxu0 0.0
    %260 = vmatprep.subr.mxu0 0.0
    %261 = vmatpush1.msra.mxu0 0.0
    %262 = vmatprep.subr.mxu0 0.0
    %263 = vmatpush1.msra.mxu0 0.0
    %264 = vmatprep.subr.mxu0 0.0
    %265 = vmatpush1.msra.mxu0 0.0
    %266 = vmatprep.subr.mxu0 0.0
    %267 = vmatpush1.msra.mxu0 0.0
    %268 = vmatprep.subr.mxu0 0.0
    %269 = vmatpush1.msra.mxu0 0.0
    %270 = vmatprep.subr.mxu0 0.0
    %271 = vmatpush1.msra.mxu0 0.0
    %272 = vmatprep.subr.mxu0 0.0
    %273 = vmatpush1.msra.mxu0 0.0
    %274 = vmatprep.subr.mxu0 0.0
    %275 = vmatpush1.msra.mxu0 0.0
    %276 = vmatprep.subr.mxu0 0.0
    %277 = vmatpush1.msra.mxu0 0.0
    %278 = vmatprep.subr.mxu0 0.0
    %279 = vmatpush1.msra.mxu0 0.0
    %280 = vmatprep.subr.mxu0 0.0
    %281 = vmatpush1.msra.mxu0 0.0
    %282 = vmatprep.subr.mxu0 0.0
    %283 = vmatpush1.msra.mxu0 0.0
    %284 = vmatprep.subr.mxu0 0.0
    %285 = vmatpush1.msra.mxu0 0.0
    %286 = vmatprep.subr.mxu0 0.0
    %287 = vmatpush1.msra.mxu0 0.0
    %288 = vmatprep.subr.mxu0 0.0
    %289 = vmatpush1.msra.mxu0 0.0
    %290 = vmatprep.subr.mxu0 0.0
    %291 = vmatpush1.msra.mxu0 0.0
    %292 = vmatprep.subr.mxu0 0.0
    %293 = vmatpush1.msra.mxu0 0.0
    %294 = vmatprep.mubr.f32.mxu0 0.0
    %295 = vmatmul.mubr.f32.gmra.mrb[0].mxu0 %v54
    %v296 = vpop.f32.mrb[0].mxu0
    %v297 = vadd.f32 %v222, %v296
    %v298 = vpop.f32.mrb[0].mxu0
    %299 = vmatprep.mubr.f32.mxu0 0.0
    %300 = vmatmul.mubr.f32.gmra.mrb[0].mxu0 %v57
    %v301 = vpop.f32.mrb[0].mxu0
    %v302 = vadd.f32 %v223, %v301
    %v303 = vpop.f32.mrb[0].mxu0
    %304 = vmatprep.mubr.f32.mxu0 0.0
    %305 = vmatmul.mubr.f32.gmra.mrb[0].mxu0 %v60
    %v306 = vpop.f32.mrb[0].mxu0
    %v307 = vadd.f32 %v224, %v306
    %v308 = vpop.f32.mrb[0].mxu0
    %309 = vmatprep.mubr.f32.mxu0 0.0
    %310 = vmatmul.mubr.f32.gmra.mrb[0].mxu0 %v63
    %v311 = vpop.f32.mrb[0].mxu0
    %v312 = vadd.f32 %v225, %v311
    %v313 = vpop.f32.mrb[0].mxu0
    %314 = vmatprep.mubr.f32.mxu0 0.0
    %315 = vmatmul.mubr.f32.gmra.mrb[0].mxu0 %v66
    %v316 = vpop.f32.mrb[0].mxu0
    %v317 = vadd.f32 %v226, %v316
    %v318 = vpop.f32.mrb[0].mxu0
    %319 = vmatprep.mubr.f32.mxu0 0.0
    %320 = vmatmul.mubr.f32.gmra.mrb[0].mxu0 %v69
    %v321 = vpop.f32.mrb[0].mxu0
    %v322 = vadd.f32 %v227, %v321
    %v323 = vpop.f32.mrb[0].mxu0
    %324 = vmatprep.mubr.f32.mxu0 0.0
    %325 = vmatmul.mubr.f32.gmra.mrb[0].mxu0 %v72
    %v326 = vpop.f32.mrb[0].mxu0
    %v327 = vadd.f32 %v228, %v326
    %v328 = vpop.f32.mrb[0].mxu0
    %329 = vmatprep.mubr.f32.mxu0 0.0
    %330 = vmatmul.mubr.f32.gmra.mrb[0].mxu0 %v75
    %v331 = vpop.f32.mrb[0].mxu0
    %v332 = vadd.f32 %v229, %v331
    %v333 = vpop.f32.mrb[0].mxu0
    %334 = vdwg.mxu0
    %v335 = vmul.f32 %v26, %v26
    %v336 = vmul.f32 %v27, %v27
    %v337 = vmul.f32 %v28, %v28
    %v338 = vmul.f32 %v29, %v29
    %v339 = vmul.f32 %v30, %v30
    %v340 = vmul.f32 %v31, %v31
    %v341 = vmul.f32 %v32, %v32
    %v342 = vmul.f32 %v33, %v33
    %s343 = scalar_lea.vmem [#allocation2], 48
    %v344 = vld [vmem:[%s343] sm:$0xff]
    %v345 = vld [vmem:[%s343 + $0x8] sm:$0xff]
    %v346 = vld [vmem:[%s343 + $0x10] sm:$0xff]
    %347 = vmatprep.subr.mxu0 0.0
    %348 = vmatpush1.msra.mxu0 %v344
    %349 = vmatprep.subr.mxu0 0.0
    %350 = vmatpush1.msra.mxu0 %v345
    %351 = vmatprep.subr.mxu0 0.0
    %352 = vmatpush1.msra.mxu0 %v346
    %353 = vmatprep.subr.mxu0 0.0
    %354 = vmatpush1.msra.mxu0 0.0
    %355 = vmatprep.subr.mxu0 0.0
    %356 = vmatpush1.msra.mxu0 0.0
    %357 = vmatprep.subr.mxu0 0.0
    %358 = vmatpush1.msra.mxu0 0.0
    %359 = vmatprep.subr.mxu0 0.0
    %360 = vmatpush1.msra.mxu0 0.0
    %361 = vmatprep.subr.mxu0 0.0
    %362 = vmatpush1.msra.mxu0 0.0
    %363 = vmatprep.subr.mxu0 0.0
    %364 = vmatpush1.msra.mxu0 0.0
    %365 = vmatprep.subr.mxu0 0.0
    %366 = vmatpush1.msra.mxu0 0.0
    %367 = vmatprep.subr.mxu0 0.0
    %368 = vmatpush1.msra.mxu0 0.0
    %369 = vmatprep.subr.mxu0 0.0
    %370 = vmatpush1.msra.mxu0 0.0
    %371 = vmatprep.subr.mxu0 0.0
    %372 = vmatpush1.msra.mxu0 0.0
    %373 = vmatprep.subr.mxu0 0.0
    %374 = vmatpush1.msra.mxu0 0.0
    %375 = vmatprep.subr.mxu0 0.0
    %376 = vmatpush1.msra.mxu0 0.0
    %377 = vmatprep.subr.mxu0 0.0
    %378 = vmatpush1.msra.mxu0 0.0
    %379 = vmatprep.subr.mxu0 0.0
    %380 = vmatpush1.msra.mxu0 0.0
    %381 = vmatprep.subr.mxu0 0.0
    %382 = vmatpush1.msra.mxu0 0.0
    %383 = vmatprep.subr.mxu0 0.0
    %384 = vmatpush1.msra.mxu0 0.0
    %385 = vmatprep.subr.mxu0 0.0
    %386 = vmatpush1.msra.mxu0 0.0
    %387 = vmatprep.subr.mxu0 0.0
    %388 = vmatpush1.msra.mxu0 0.0
    %389 = vmatprep.subr.mxu0 0.0
    %390 = vmatpush1.msra.mxu0 0.0
    %391 = vmatprep.subr.mxu0 0.0
    %392 = vmatpush1.msra.mxu0 0.0
    %393 = vmatprep.subr.mxu0 0.0
    %394 = vmatpush1.msra.mxu0 0.0
    %395 = vmatprep.subr.mxu0 0.0
    %396 = vmatpush1.msra.mxu0 0.0
    %397 = vmatprep.subr.mxu0 0.0
    %398 = vmatpush1.msra.mxu0 0.0
    %399 = vmatprep.subr.mxu0 0.0
    %400 = vmatpush1.msra.mxu0 0.0
    %401 = vmatprep.subr.mxu0 0.0
    %402 = vmatpush1.msra.mxu0 0.0
    %403 = vmatprep.subr.mxu0 0.0
    %404 = vmatpush1.msra.mxu0 0.0
    %405 = vmatprep.subr.mxu0 0.0
    %406 = vmatpush1.msra.mxu0 0.0
    %407 = vmatprep.subr.mxu0 0.0
    %408 = vmatpush1.msra.mxu0 0.0
    %409 = vmatprep.subr.mxu0 0.0
    %410 = vmatpush1.msra.mxu0 0.0
    %411 = vmatprep.mubr.f32.mxu0 0.0
    %412 = vmatmul.mubr.f32.gmra.mrb[0].mxu0 %v54
    %v413 = vpop.f32.mrb[0].mxu0
    %v414 = vadd.f32 0.0, %v413
    %v415 = vpop.f32.mrb[0].mxu0
    %416 = vmatprep.mubr.f32.mxu0 0.0
    %417 = vmatmul.mubr.f32.gmra.mrb[0].mxu0 %v57
    %v418 = vpop.f32.mrb[0].mxu0
    %v419 = vadd.f32 0.0, %v418
    %v420 = vpop.f32.mrb[0].mxu0
    %421 = vmatprep.mubr.f32.mxu0 0.0
    %422 = vmatmul.mubr.f32.gmra.mrb[0].mxu0 %v60
    %v423 = vpop.f32.mrb[0].mxu0
    %v424 = vadd.f32 0.0, %v423
    %v425 = vpop.f32.mrb[0].mxu0
    %426 = vmatprep.mubr.f32.mxu0 0.0
    %427 = vmatmul.mubr.f32.gmra.mrb[0].mxu0 %v63
    %v428 = vpop.f32.mrb[0].mxu0
    %v429 = vadd.f32 0.0, %v428
    %v430 = vpop.f32.mrb[0].mxu0
    %431 = vmatprep.mubr.f32.mxu0 0.0
    %432 = vmatmul.mubr.f32.gmra.mrb[0].mxu0 %v66
    %v433 = vpop.f32.mrb[0].mxu0
    %v434 = vadd.f32 0.0, %v433
    %v435 = vpop.f32.mrb[0].mxu0
    %436 = vmatprep.mubr.f32.mxu0 0.0
    %437 = vmatmul.mubr.f32.gmra.mrb[0].mxu0 %v69
    %v438 = vpop.f32.mrb[0].mxu0
    %v439 = vadd.f32 0.0, %v438
    %v440 = vpop.f32.mrb[0].mxu0
    %441 = vmatprep.mubr.f32.mxu0 0.0
    %442 = vmatmul.mubr.f32.gmra.mrb[0].mxu0 %v72
    %v443 = vpop.f32.mrb[0].mxu0
    %v444 = vadd.f32 0.0, %v443
    %v445 = vpop.f32.mrb[0].mxu0
    %446 = vmatprep.mubr.f32.mxu0 0.0
    %447 = vmatmul.mubr.f32.gmra.mrb[0].mxu0 %v75
    %v448 = vpop.f32.mrb[0].mxu0
    %v449 = vadd.f32 0.0, %v448
    %v450 = vpop.f32.mrb[0].mxu0
    %451 = vdwg.mxu0
    %453 = vset.pattern.permute.xlu0 0
    %454 = vperm.xlu0 %453, %v335
    %v455 = vpop.permute.xlu0 %454
    %458 = vset.pattern.permute.xlu0 0
    %459 = vperm.xlu0 %458, %v336
    %v460 = vpop.permute.xlu0 %459
    %463 = vset.pattern.permute.xlu0 0
    %464 = vperm.xlu0 %463, %v337
    %v465 = vpop.permute.xlu0 %464
    %468 = vset.pattern.permute.xlu0 0
    %469 = vperm.xlu0 %468, %v338
    %v470 = vpop.permute.xlu0 %469
    %473 = vset.pattern.permute.xlu0 0
    %474 = vperm.xlu0 %473, %v339
    %v475 = vpop.permute.xlu0 %474
    %478 = vset.pattern.permute.xlu0 0
    %479 = vperm.xlu0 %478, %v340
    %v480 = vpop.permute.xlu0 %479
    %483 = vset.pattern.permute.xlu0 0
    %484 = vperm.xlu0 %483, %v341
    %v485 = vpop.permute.xlu0 %484
    %488 = vset.pattern.permute.xlu0 0
    %489 = vperm.xlu0 %488, %v342
    %v490 = vpop.permute.xlu0 %489
    %v492 = vmul.f32 %v455, %v414
    %v493 = vmul.f32 %v460, %v419
    %v494 = vmul.f32 %v465, %v424
    %v495 = vmul.f32 %v470, %v429
    %v496 = vmul.f32 %v475, %v434
    %v497 = vmul.f32 %v480, %v439
    %v498 = vmul.f32 %v485, %v444
    %v499 = vmul.f32 %v490, %v449
    %v500 = vadd.f32 %v297, %v492
    %v501 = vadd.f32 %v302, %v493
    %v502 = vadd.f32 %v307, %v494
    %v503 = vadd.f32 %v312, %v495
    %v504 = vadd.f32 %v317, %v496
    %v505 = vadd.f32 %v322, %v497
    %v506 = vadd.f32 %v327, %v498
    %v507 = vadd.f32 %v332, %v499
    %v508 = vsub.f32 %v26, 0.33
    %v509 = vsub.f32 %v27, 0.33
    %v510 = vsub.f32 %v28, 0.33
    %v511 = vsub.f32 %v29, 0.33
    %v512 = vsub.f32 %v30, 0.33
    %v513 = vsub.f32 %v31, 0.33
    %v514 = vsub.f32 %v32, 0.33
    %v515 = vsub.f32 %v33, 0.33
    %v516 = vmax.f32 %v508, 0.0
    %v517 = vmax.f32 %v509, 0.0
    %v518 = vmax.f32 %v510, 0.0
    %v519 = vmax.f32 %v511, 0.0
    %v520 = vmax.f32 %v512, 0.0
    %v521 = vmax.f32 %v513, 0.0
    %v522 = vmax.f32 %v514, 0.0
    %v523 = vmax.f32 %v515, 0.0
    %v524 = vmul.f32 %v516, %v516
    %v525 = vmul.f32 %v517, %v517
    %v526 = vmul.f32 %v518, %v518
    %v527 = vmul.f32 %v519, %v519
    %v528 = vmul.f32 %v520, %v520
    %v529 = vmul.f32 %v521, %v521
    %v530 = vmul.f32 %v522, %v522
    %v531 = vmul.f32 %v523, %v523
    %s532 = scalar_lea.vmem [#allocation2], 72
    %v533 = vld [vmem:[%s532] sm:$0xff]
    %v534 = vld [vmem:[%s532 + $0x8] sm:$0xff]
    %v535 = vld [vmem:[%s532 + $0x10] sm:$0xff]
    %536 = vmatprep.subr.mxu0 0.0
    %537 = vmatpush1.msra.mxu0 %v533
    %538 = vmatprep.subr.mxu0 0.0
    %539 = vmatpush1.msra.mxu0 %v534
    %540 = vmatprep.subr.mxu0 0.0
    %541 = vmatpush1.msra.mxu0 %v535
    %542 = vmatprep.subr.mxu0 0.0
    %543 = vmatpush1.msra.mxu0 0.0
    %544 = vmatprep.subr.mxu0 0.0
    %545 = vmatpush1.msra.mxu0 0.0
    %546 = vmatprep.subr.mxu0 0.0
    %547 = vmatpush1.msra.mxu0 0.0
    %548 = vmatprep.subr.mxu0 0.0
    %549 = vmatpush1.msra.mxu0 0.0
    %550 = vmatprep.subr.mxu0 0.0
    %551 = vmatpush1.msra.mxu0 0.0
    %552 = vmatprep.subr.mxu0 0.0
    %553 = vmatpush1.msra.mxu0 0.0
    %554 = vmatprep.subr.mxu0 0.0
    %555 = vmatpush1.msra.mxu0 0.0
    %556 = vmatprep.subr.mxu0 0.0
    %557 = vmatpush1.msra.mxu0 0.0
    %558 = vmatprep.subr.mxu0 0.0
    %559 = vmatpush1.msra.mxu0 0.0
    %560 = vmatprep.subr.mxu0 0.0
    %561 = vmatpush1.msra.mxu0 0.0
    %562 = vmatprep.subr.mxu0 0.0
    %563 = vmatpush1.msra.mxu0 0.0
    %564 = vmatprep.subr.mxu0 0.0
    %565 = vmatpush1.msra.mxu0 0.0
    %566 = vmatprep.subr.mxu0 0.0
    %567 = vmatpush1.msra.mxu0 0.0
    %568 = vmatprep.subr.mxu0 0.0
    %569 = vmatpush1.msra.mxu0 0.0
    %570 = vmatprep.subr.mxu0 0.0
    %571 = vmatpush1.msra.mxu0 0.0
    %572 = vmatprep.subr.mxu0 0.0
    %573 = vmatpush1.msra.mxu0 0.0
    %574 = vmatprep.subr.mxu0 0.0
    %575 = vmatpush1.msra.mxu0 0.0
    %576 = vmatprep.subr.mxu0 0.0
    %577 = vmatpush1.msra.mxu0 0.0
    %578 = vmatprep.subr.mxu0 0.0
    %579 = vmatpush1.msra.mxu0 0.0
    %580 = vmatprep.subr.mxu0 0.0
    %581 = vmatpush1.msra.mxu0 0.0
    %582 = vmatprep.subr.mxu0 0.0
    %583 = vmatpush1.msra.mxu0 0.0
    %584 = vmatprep.subr.mxu0 0.0
    %585 = vmatpush1.msra.mxu0 0.0
    %586 = vmatprep.subr.mxu0 0.0
    %587 = vmatpush1.msra.mxu0 0.0
    %588 = vmatprep.subr.mxu0 0.0
    %589 = vmatpush1.msra.mxu0 0.0
    %590 = vmatprep.subr.mxu0 0.0
    %591 = vmatpush1.msra.mxu0 0.0
    %592 = vmatprep.subr.mxu0 0.0
    %593 = vmatpush1.msra.mxu0 0.0
    %594 = vmatprep.subr.mxu0 0.0
    %595 = vmatpush1.msra.mxu0 0.0
    %596 = vmatprep.subr.mxu0 0.0
    %597 = vmatpush1.msra.mxu0 0.0
    %598 = vmatprep.subr.mxu0 0.0
    %599 = vmatpush1.msra.mxu0 0.0
    %600 = vmatprep.mubr.f32.mxu0 0.0
    %601 = vmatmul.mubr.f32.gmra.mrb[0].mxu0 %v54
    %v602 = vpop.f32.mrb[0].mxu0
    %v603 = vadd.f32 0.0, %v602
    %v604 = vpop.f32.mrb[0].mxu0
    %605 = vmatprep.mubr.f32.mxu0 0.0
    %606 = vmatmul.mubr.f32.gmra.mrb[0].mxu0 %v57
    %v607 = vpop.f32.mrb[0].mxu0
    %v608 = vadd.f32 0.0, %v607
    %v609 = vpop.f32.mrb[0].mxu0
    %610 = vmatprep.mubr.f32.mxu0 0.0
    %611 = vmatmul.mubr.f32.gmra.mrb[0].mxu0 %v60
    %v612 = vpop.f32.mrb[0].mxu0
    %v613 = vadd.f32 0.0, %v612
    %v614 = vpop.f32.mrb[0].mxu0
    %615 = vmatprep.mubr.f32.mxu0 0.0
    %616 = vmatmul.mubr.f32.gmra.mrb[0].mxu0 %v63
    %v617 = vpop.f32.mrb[0].mxu0
    %v618 = vadd.f32 0.0, %v617
    %v619 = vpop.f32.mrb[0].mxu0
    %620 = vmatprep.mubr.f32.mxu0 0.0
    %621 = vmatmul.mubr.f32.gmra.mrb[0].mxu0 %v66
    %v622 = vpop.f32.mrb[0].mxu0
    %v623 = vadd.f32 0.0, %v622
    %v624 = vpop.f32.mrb[0].mxu0
    %625 = vmatprep.mubr.f32.mxu0 0.0
    %626 = vmatmul.mubr.f32.gmra.mrb[0].mxu0 %v69
    %v627 = vpop.f32.mrb[0].mxu0
    %v628 = vadd.f32 0.0, %v627
    %v629 = vpop.f32.mrb[0].mxu0
    %630 = vmatprep.mubr.f32.mxu0 0.0
    %631 = vmatmul.mubr.f32.gmra.mrb[0].mxu0 %v72
    %v632 = vpop.f32.mrb[0].mxu0
    %v633 = vadd.f32 0.0, %v632
    %v634 = vpop.f32.mrb[0].mxu0
    %635 = vmatprep.mubr.f32.mxu0 0.0
    %636 = vmatmul.mubr.f32.gmra.mrb[0].mxu0 %v75
    %v637 = vpop.f32.mrb[0].mxu0
    %v638 = vadd.f32 0.0, %v637
    %v639 = vpop.f32.mrb[0].mxu0
    %640 = vdwg.mxu0
    %642 = vset.pattern.permute.xlu0 0
    %643 = vperm.xlu0 %642, %v524
    %v644 = vpop.permute.xlu0 %643
    %647 = vset.pattern.permute.xlu0 0
    %648 = vperm.xlu0 %647, %v525
    %v649 = vpop.permute.xlu0 %648
    %652 = vset.pattern.permute.xlu0 0
    %653 = vperm.xlu0 %652, %v526
    %v654 = vpop.permute.xlu0 %653
    %657 = vset.pattern.permute.xlu0 0
    %658 = vperm.xlu0 %657, %v527
    %v659 = vpop.permute.xlu0 %658
    %662 = vset.pattern.permute.xlu0 0
    %663 = vperm.xlu0 %662, %v528
    %v664 = vpop.permute.xlu0 %663
    %667 = vset.pattern.permute.xlu0 0
    %668 = vperm.xlu0 %667, %v529
    %v669 = vpop.permute.xlu0 %668
    %672 = vset.pattern.permute.xlu0 0
    %673 = vperm.xlu0 %672, %v530
    %v674 = vpop.permute.xlu0 %673
    %677 = vset.pattern.permute.xlu0 0
    %678 = vperm.xlu0 %677, %v531
    %v679 = vpop.permute.xlu0 %678
    %v681 = vmul.f32 %v644, %v603
    %v682 = vmul.f32 %v649, %v608
    %v683 = vmul.f32 %v654, %v613
    %v684 = vmul.f32 %v659, %v618
    %v685 = vmul.f32 %v664, %v623
    %v686 = vmul.f32 %v669, %v628
    %v687 = vmul.f32 %v674, %v633
    %v688 = vmul.f32 %v679, %v638
    %v689 = vadd.f32 %v500, %v681
    %v690 = vadd.f32 %v501, %v682
    %v691 = vadd.f32 %v502, %v683
    %v692 = vadd.f32 %v503, %v684
    %v693 = vadd.f32 %v504, %v685
    %v694 = vadd.f32 %v505, %v686
    %v695 = vadd.f32 %v506, %v687
    %v696 = vadd.f32 %v507, %v688
    %v697 = vsub.f32 %v26, 0.66
    %v698 = vsub.f32 %v27, 0.66
    %v699 = vsub.f32 %v28, 0.66
    %v700 = vsub.f32 %v29, 0.66
    %v701 = vsub.f32 %v30, 0.66
    %v702 = vsub.f32 %v31, 0.66
    %v703 = vsub.f32 %v32, 0.66
    %v704 = vsub.f32 %v33, 0.66
    %v705 = vmax.f32 %v697, 0.0
    %v706 = vmax.f32 %v698, 0.0
    %v707 = vmax.f32 %v699, 0.0
    %v708 = vmax.f32 %v700, 0.0
    %v709 = vmax.f32 %v701, 0.0
    %v710 = vmax.f32 %v702, 0.0
    %v711 = vmax.f32 %v703, 0.0
    %v712 = vmax.f32 %v704, 0.0
    %v713 = vmul.f32 %v705, %v705
    %v714 = vmul.f32 %v706, %v706
    %v715 = vmul.f32 %v707, %v707
    %v716 = vmul.f32 %v708, %v708
    %v717 = vmul.f32 %v709, %v709
    %v718 = vmul.f32 %v710, %v710
    %v719 = vmul.f32 %v711, %v711
    %v720 = vmul.f32 %v712, %v712
    %s721 = scalar_lea.vmem [#allocation2], 96
    %v722 = vld [vmem:[%s721] sm:$0xff]
    %v723 = vld [vmem:[%s721 + $0x8] sm:$0xff]
    %v724 = vld [vmem:[%s721 + $0x10] sm:$0xff]
    %725 = vmatprep.subr.mxu0 0.0
    %726 = vmatpush1.msra.mxu0 %v722
    %727 = vmatprep.subr.mxu0 0.0
    %728 = vmatpush1.msra.mxu0 %v723
    %729 = vmatprep.subr.mxu0 0.0
    %730 = vmatpush1.msra.mxu0 %v724
    %731 = vmatprep.subr.mxu0 0.0
    %732 = vmatpush1.msra.mxu0 0.0
    %733 = vmatprep.subr.mxu0 0.0
    %734 = vmatpush1.msra.mxu0 0.0
    %735 = vmatprep.subr.mxu0 0.0
    %736 = vmatpush1.msra.mxu0 0.0
    %737 = vmatprep.subr.mxu0 0.0
    %738 = vmatpush1.msra.mxu0 0.0
    %739 = vmatprep.subr.mxu0 0.0
    %740 = vmatpush1.msra.mxu0 0.0
    %741 = vmatprep.subr.mxu0 0.0
    %742 = vmatpush1.msra.mxu0 0.0
    %743 = vmatprep.subr.mxu0 0.0
    %744 = vmatpush1.msra.mxu0 0.0
    %745 = vmatprep.subr.mxu0 0.0
    %746 = vmatpush1.msra.mxu0 0.0
    %747 = vmatprep.subr.mxu0 0.0
    %748 = vmatpush1.msra.mxu0 0.0
    %749 = vmatprep.subr.mxu0 0.0
    %750 = vmatpush1.msra.mxu0 0.0
    %751 = vmatprep.subr.mxu0 0.0
    %752 = vmatpush1.msra.mxu0 0.0
    %753 = vmatprep.subr.mxu0 0.0
    %754 = vmatpush1.msra.mxu0 0.0
    %755 = vmatprep.subr.mxu0 0.0
    %756 = vmatpush1.msra.mxu0 0.0
    %757 = vmatprep.subr.mxu0 0.0
    %758 = vmatpush1.msra.mxu0 0.0
    %759 = vmatprep.subr.mxu0 0.0
    %760 = vmatpush1.msra.mxu0 0.0
    %761 = vmatprep.subr.mxu0 0.0
    %762 = vmatpush1.msra.mxu0 0.0
    %763 = vmatprep.subr.mxu0 0.0
    %764 = vmatpush1.msra.mxu0 0.0
    %765 = vmatprep.subr.mxu0 0.0
    %766 = vmatpush1.msra.mxu0 0.0
    %767 = vmatprep.subr.mxu0 0.0
    %768 = vmatpush1.msra.mxu0 0.0
    %769 = vmatprep.subr.mxu0 0.0
    %770 = vmatpush1.msra.mxu0 0.0
    %771 = vmatprep.subr.mxu0 0.0
    %772 = vmatpush1.msra.mxu0 0.0
    %773 = vmatprep.subr.mxu0 0.0
    %774 = vmatpush1.msra.mxu0 0.0
    %775 = vmatprep.subr.mxu0 0.0
    %776 = vmatpush1.msra.mxu0 0.0
    %777 = vmatprep.subr.mxu0 0.0
    %778 = vmatpush1.msra.mxu0 0.0
    %779 = vmatprep.subr.mxu0 0.0
    %780 = vmatpush1.msra.mxu0 0.0
    %781 = vmatprep.subr.mxu0 0.0
    %782 = vmatpush1.msra.mxu0 0.0
    %783 = vmatprep.subr.mxu0 0.0
    %784 = vmatpush1.msra.mxu0 0.0
    %785 = vmatprep.subr.mxu0 0.0
    %786 = vmatpush1.msra.mxu0 0.0
    %787 = vmatprep.subr.mxu0 0.0
    %788 = vmatpush1.msra.mxu0 0.0
    %789 = vmatprep.mubr.f32.mxu0 0.0
    %790 = vmatmul.mubr.f32.gmra.mrb[0].mxu0 %v54
    %v791 = vpop.f32.mrb[0].mxu0
    %v792 = vadd.f32 0.0, %v791
    %v793 = vpop.f32.mrb[0].mxu0
    %794 = vmatprep.mubr.f32.mxu0 0.0
    %795 = vmatmul.mubr.f32.gmra.mrb[0].mxu0 %v57
    %v796 = vpop.f32.mrb[0].mxu0
    %v797 = vadd.f32 0.0, %v796
    %v798 = vpop.f32.mrb[0].mxu0
    %799 = vmatprep.mubr.f32.mxu0 0.0
    %800 = vmatmul.mubr.f32.gmra.mrb[0].mxu0 %v60
    %v801 = vpop.f32.mrb[0].mxu0
    %v802 = vadd.f32 0.0, %v801
    %v803 = vpop.f32.mrb[0].mxu0
    %804 = vmatprep.mubr.f32.mxu0 0.0
    %805 = vmatmul.mubr.f32.gmra.mrb[0].mxu0 %v63
    %v806 = vpop.f32.mrb[0].mxu0
    %v807 = vadd.f32 0.0, %v806
    %v808 = vpop.f32.mrb[0].mxu0
    %809 = vmatprep.mubr.f32.mxu0 0.0
    %810 = vmatmul.mubr.f32.gmra.mrb[0].mxu0 %v66
    %v811 = vpop.f32.mrb[0].mxu0
    %v812 = vadd.f32 0.0, %v811
    %v813 = vpop.f32.mrb[0].mxu0
    %814 = vmatprep.mubr.f32.mxu0 0.0
    %815 = vmatmul.mubr.f32.gmra.mrb[0].mxu0 %v69
    %v816 = vpop.f32.mrb[0].mxu0
    %v817 = vadd.f32 0.0, %v816
    %v818 = vpop.f32.mrb[0].mxu0
    %819 = vmatprep.mubr.f32.mxu0 0.0
    %820 = vmatmul.mubr.f32.gmra.mrb[0].mxu0 %v72
    %v821 = vpop.f32.mrb[0].mxu0
    %v822 = vadd.f32 0.0, %v821
    %v823 = vpop.f32.mrb[0].mxu0
    %824 = vmatprep.mubr.f32.mxu0 0.0
    %825 = vmatmul.mubr.f32.gmra.mrb[0].mxu0 %v75
    %v826 = vpop.f32.mrb[0].mxu0
    %v827 = vadd.f32 0.0, %v826
    %v828 = vpop.f32.mrb[0].mxu0
    %829 = vdwg.mxu0
    %831 = vset.pattern.permute.xlu0 0
    %832 = vperm.xlu0 %831, %v713
    %v833 = vpop.permute.xlu0 %832
    %836 = vset.pattern.permute.xlu0 0
    %837 = vperm.xlu0 %836, %v714
    %v838 = vpop.permute.xlu0 %837
    %841 = vset.pattern.permute.xlu0 0
    %842 = vperm.xlu0 %841, %v715
    %v843 = vpop.permute.xlu0 %842
    %846 = vset.pattern.permute.xlu0 0
    %847 = vperm.xlu0 %846, %v716
    %v848 = vpop.permute.xlu0 %847
    %851 = vset.pattern.permute.xlu0 0
    %852 = vperm.xlu0 %851, %v717
    %v853 = vpop.permute.xlu0 %852
    %856 = vset.pattern.permute.xlu0 0
    %857 = vperm.xlu0 %856, %v718
    %v858 = vpop.permute.xlu0 %857
    %861 = vset.pattern.permute.xlu0 0
    %862 = vperm.xlu0 %861, %v719
    %v863 = vpop.permute.xlu0 %862
    %866 = vset.pattern.permute.xlu0 0
    %867 = vperm.xlu0 %866, %v720
    %v868 = vpop.permute.xlu0 %867
    %v870 = vmul.f32 %v833, %v792
    %v871 = vmul.f32 %v838, %v797
    %v872 = vmul.f32 %v843, %v802
    %v873 = vmul.f32 %v848, %v807
    %v874 = vmul.f32 %v853, %v812
    %v875 = vmul.f32 %v858, %v817
    %v876 = vmul.f32 %v863, %v822
    %v877 = vmul.f32 %v868, %v827
    %v878 = vadd.f32 %v689, %v870
    %v879 = vadd.f32 %v690, %v871
    %v880 = vadd.f32 %v691, %v872
    %v881 = vadd.f32 %v692, %v873
    %v882 = vadd.f32 %v693, %v874
    %v883 = vadd.f32 %v694, %v875
    %v884 = vadd.f32 %v695, %v876
    %v885 = vadd.f32 %v696, %v877
    %v886 = vmax.f32 %v878, 0.0
    %v887 = vmax.f32 %v879, 0.0
    %v888 = vmax.f32 %v880, 0.0
    %v889 = vmax.f32 %v881, 0.0
    %v890 = vmax.f32 %v882, 0.0
    %v891 = vmax.f32 %v883, 0.0
    %v892 = vmax.f32 %v884, 0.0
    %v893 = vmax.f32 %v885, 0.0
    %894 = vst [vmem:[#allocation5] sm:$0xff] %v886
    %895 = vst [vmem:[#allocation5 + $0x8] sm:$0xff] %v887
    %896 = vst [vmem:[#allocation5 + $0x10] sm:$0xff] %v888
    %897 = vst [vmem:[#allocation5 + $0x18] sm:$0xff] %v889
    %898 = vst [vmem:[#allocation5 + $0x20] sm:$0xff] %v890
    %899 = vst [vmem:[#allocation5 + $0x28] sm:$0xff] %v891
    %900 = vst [vmem:[#allocation5 + $0x30] sm:$0xff] %v892
    %901 = vst [vmem:[#allocation5 + $0x38] sm:$0xff] %v893
    // Predicated region
    $region14: #{tpu_custom_call.1} parent=1 // pred_check
      _
    $region15: #{tpu_custom_call.1} parent=1 // pred_check_branch
      %903 = sbr.rel (0) target = $region17
    $region16: #{tpu_custom_call.1} parent=1 // pred_region
      %s905 = ssub.s32 1024, 1024
      %906 = vsyncadd [#allocation4], %s905
      %s907 = sshll.u32 [#allocation5], 4
      %s908 = int_to_ptr.vmem [resolvable:$true] %s907
      %913 = dma.vmem_to_hbm [thread:$0]  %s908, 1024, %s2, [#allocation4], 128, 128, 8
    $region17: #{tpu_custom_call.1} parent=1 // pred_fallthru
      _
    // Predicated region
    $region18: #{tpu_custom_call.1} parent=1 // pred_check
      _
    $region19: #{tpu_custom_call.1} parent=1 // pred_check_branch
      %915 = sbr.rel (0) target = $region21
    $region20: #{tpu_custom_call.1} parent=1 // pred_region
      %916 = dma.done [#allocation4], 1024
    $region21: #{tpu_custom_call.1} parent=1 // pred_fallthru
      _
    %917 = vsyncpa [#allocation3], 1
    %918 = vsyncpa [#allocation4], 1

</llo_original>
